<compile_context>
chip_gen: v7x
topology: tpu7x:2x2x1
jax: 0.10.0
libtpu: 0.0.40
codegen_flags: <defaults>
</compile_context>

<pallas_src>
import functools

import jax
import jax.numpy as jnp
import numpy as np
from jax.experimental import pallas as pl
from jax.experimental.pallas import tpu as pltpu

_CHUNK = 512  # lanes per inner chunk: [units, 512] f32 = 16 vregs per intermediate


def _round_up(x, m):
    return ((x + m - 1) // m) * m


def _critic_kernel(xt_ref, w1_ref, b1_ref, w2_ref, b2_ref, w3_ref, b3_ref,
                   o_ref, *, num_chunks, chunk):
    # xt_ref: [state_dim, TB] f32  (batch on the lane axis)
    # w1_ref: [units, state_dim], w2_ref: [units, units]  f32 (VMEM-resident)
    # b1/b2:  [units, 1] f32, w3_ref: [units, 1] f32, b3_ref: [1, 1] f32
    # o_ref:  [num_chunks, chunk] f32 (lane-dense; row c = batch lanes of chunk c)
    w1 = w1_ref[...]
    b1 = b1_ref[...]
    w2 = w2_ref[...]
    b2 = b2_ref[...]
    w3 = w3_ref[...]
    b3 = b3_ref[...]

    def chunk_body(c, carry):
        start = pl.multiple_of(c * chunk, chunk)
        xc = xt_ref[:, pl.ds(start, chunk)]                       # [state_dim, chunk]
        # fc1 + ReLU (dropout1 is identity in eval mode)
        h1 = jnp.dot(w1, xc, preferred_element_type=jnp.float32)  # [units, chunk]
        h1 = jnp.maximum(h1 + b1, 0.0)
        # fc2 + ReLU (dropout2 is identity in eval mode)
        h2 = jnp.dot(w2, h1, preferred_element_type=jnp.float32)  # [units, chunk]
        h2 = jnp.maximum(h2 + b2, 0.0)
        # fc3 (single output unit): VPU multiply + sublane (XLU) reduce keeps
        # the result lane-dense instead of a 1-column MXU matmul.
        val = jnp.sum(w3 * h2, axis=0, keepdims=True) + b3        # [1, chunk]
        o_ref[pl.ds(c, 1), :] = val
        return carry

    jax.lax.fori_loop(0, num_chunks, chunk_body, 0, unroll=True)


def critic_forward_xt(xt, params, *, block_rows=4096):
    """Critic forward on an already-transposed input.

    xt:     [state_dim, B] float32 (batch on the minor/lane axis)
    params: PyTorch-layout weights (see init_params)
    returns value estimates [B, 1] float32.
    """
    w1, b1, w2, b2, w3, b3 = params
    state_dim, B = xt.shape
    units = w1.shape[0]

    # Batch tile: block_rows lanes/step, rounded to a multiple of 8*_CHUNK so the
    # (nc, 512) output block stays (8,128)-aligned whenever grid > 1. Big tiles
    # amortize the ~0.35us/step pipeline overhead; small batches use one step
    # just big enough. VMEM use is tiny (f32 x tile = state_dim*TB*4 B, double
    # buffered) — only raise vmem_limit_bytes if block_rows is pushed past ~16K
    # on v5e (16 MiB scoped-VMEM default).
    tb_target = _round_up(block_rows, 8 * _CHUNK)
    tb = min(tb_target, _round_up(B, _CHUNK))
    chunk = min(_CHUNK, tb)
    num_chunks = tb // chunk
    b_pad = _round_up(B, tb)
    grid = b_pad // tb

    xt = xt.astype(jnp.float32)
    if b_pad != B:
        xt = jnp.pad(xt, ((0, 0), (0, b_pad - B)))

    w1c = w1.astype(jnp.float32)
    w2c = w2.astype(jnp.float32)
    b1c = b1.reshape(units, 1).astype(jnp.float32)
    b2c = b2.reshape(units, 1).astype(jnp.float32)
    w3c = w3.reshape(units, 1).astype(jnp.float32)  # column; broadcasts vs [units, chunk]
    b3c = b3.reshape(1, 1).astype(jnp.float32)

    resident = lambda shape: pl.BlockSpec(shape, lambda i: (0, 0))
    kernel = functools.partial(_critic_kernel, num_chunks=num_chunks, chunk=chunk)

    out = pl.pallas_call(
        kernel,
        out_shape=jax.ShapeDtypeStruct((grid * num_chunks, chunk), jnp.float32),
        grid=(grid,),
        in_specs=[
            pl.BlockSpec((state_dim, tb), lambda i: (0, i)),   # streamed x^T tiles
            resident((units, state_dim)),                      # w1 (VMEM-resident)
            resident((units, 1)),                              # b1
            resident((units, units)),                          # w2
            resident((units, 1)),                              # b2
            resident((units, 1)),                              # w3 (column)
            resident((1, 1)),                                  # b3
        ],
        out_specs=pl.BlockSpec((num_chunks, chunk), lambda i: (i, 0)),
        compiler_params=pltpu.CompilerParams(
            dimension_semantics=("parallel",)),                # v7x: shard batch over both TCs
    )(xt, w1c, b1c, w2c, b2c, w3c, b3c)

    return out.reshape(b_pad)[:B].reshape(B, 1)


def critic_forward(x, params, *, block_rows=4096):
    """PyTorch-layout entry point: x is [B, state_dim] float32.

    NOTE: x.T below is one extra XLA pass over x (read + write) before the
    kernel. Produce x as [state_dim, B] upstream and call critic_forward_xt
    directly to avoid it.
    """
    return critic_forward_xt(x.T, params, block_rows=block_rows)


def init_params(key, state_dim, units):
    """PyTorch nn.Linear default init (U[-1/sqrt(fan_in), +]), PyTorch layout."""
    ks = jax.random.split(key, 6)

    def lin(kw, kb, fan_in, fan_out):
        bound = 1.0 / jnp.sqrt(fan_in)
        w = jax.random.uniform(kw, (fan_out, fan_in), jnp.float32, -bound, bound)
        b = jax.random.uniform(kb, (fan_out,), jnp.float32, -bound, bound)
        return w, b

    w1, b1 = lin(ks[0], ks[1], state_dim, units)
    w2, b2 = lin(ks[2], ks[3], units, units)
    w3, b3 = lin(ks[4], ks[5], units, 1)
    return (w1, b1, w2, b2, w3, b3)


def _numpy_ref(x, params):
    w1, b1, w2, b2, w3, b3 = (np.asarray(p, np.float32) for p in params)
    xn = np.asarray(x, np.float32)
    h1 = np.maximum(xn @ w1.T + b1, 0.0)
    h2 = np.maximum(h1 @ w2.T + b2, 0.0)
    return h2 @ w3.T + b3


if __name__ == "__main__":
    key = jax.random.PRNGKey(0)
    k_x, k_x2, k_p = jax.random.split(key, 3)

    state_dim, units = 16, 32
    params = init_params(k_p, state_dim, units)

    # Small check (matches the PyTorch module's typical call): B=2, one tile.
    B = 2
    x = jax.random.normal(k_x, (B, state_dim), dtype=jnp.float32)
    out = jax.block_until_ready(critic_forward(x, params))
    assert out.shape == (B, 1)
    ref = _numpy_ref(x, params)
    assert np.allclose(np.asarray(out), ref, atol=1e-3, rtol=1e-3), (out, ref)

    # Larger check exercising the multi-tile / multi-chunk path
    # (tb=4096, grid=2, 8 chunks of 512 lanes per step, padded last tile).
    B2 = 5000
    x2 = jax.random.normal(k_x2, (B2, state_dim), dtype=jnp.float32)
    out2 = jax.block_until_ready(critic_forward(x2, params))
    assert out2.shape == (B2, 1)
    ref2 = _numpy_ref(x2, params)
    assert np.allclose(np.asarray(out2), ref2, atol=1e-3, rtol=1e-3)

    print("KERNEL_OK")
</pallas_src>

<mosaic_0001>
module attributes {stable_mosaic.version = 11 : i64} {
  func.func @_critic_kernel(%arg0: i32, %arg1: memref<16x512xf32, #tpu.memory_space<vmem>>, %arg2: memref<32x16xf32, #tpu.memory_space<vmem>>, %arg3: memref<32x1xf32, #tpu.memory_space<vmem>>, %arg4: memref<32x32xf32, #tpu.memory_space<vmem>>, %arg5: memref<32x1xf32, #tpu.memory_space<vmem>>, %arg6: memref<32x1xf32, #tpu.memory_space<vmem>>, %arg7: memref<1x1xf32, #tpu.memory_space<vmem>>, %arg8: memref<1x512xf32, #tpu.memory_space<vmem>>) attributes {dimension_semantics = [#tpu.dimension_semantics<parallel>], iteration_bounds = array<i64: 1>, scalar_prefetch = 0 : i64, scratch_operands = 0 : i64, tpu.core_type = #tpu.core_type<tc>, window_params = [{transform_indices = @transform_0, window_bounds = array<i64: 16, 512>}, {pipeline_mode = #tpu.pipeline_mode<synchronous>, transform_indices = @transform_1, window_bounds = array<i64: 32, 16>}, {pipeline_mode = #tpu.pipeline_mode<synchronous>, transform_indices = @transform_2, window_bounds = array<i64: 32, 1>}, {pipeline_mode = #tpu.pipeline_mode<synchronous>, transform_indices = @transform_3, window_bounds = array<i64: 32, 32>}, {pipeline_mode = #tpu.pipeline_mode<synchronous>, transform_indices = @transform_4, window_bounds = array<i64: 32, 1>}, {pipeline_mode = #tpu.pipeline_mode<synchronous>, transform_indices = @transform_5, window_bounds = array<i64: 32, 1>}, {pipeline_mode = #tpu.pipeline_mode<synchronous>, transform_indices = @transform_6, window_bounds = array<i64: 1, 1>}, {transform_indices = @transform_7, window_bounds = array<i64: 1, 512>}]} {
    %c0 = arith.constant 0 : index
    %c0_0 = arith.constant 0 : index
    %0 = vector.load %arg2[%c0, %c0_0] : memref<32x16xf32, #tpu.memory_space<vmem>>, vector<32x16xf32>
    %c0_1 = arith.constant 0 : index
    %c0_2 = arith.constant 0 : index
    %1 = vector.load %arg3[%c0_1, %c0_2] : memref<32x1xf32, #tpu.memory_space<vmem>>, vector<32x1xf32>
    %c0_3 = arith.constant 0 : index
    %c0_4 = arith.constant 0 : index
    %2 = vector.load %arg4[%c0_3, %c0_4] : memref<32x32xf32, #tpu.memory_space<vmem>>, vector<32x32xf32>
    %c0_5 = arith.constant 0 : index
    %c0_6 = arith.constant 0 : index
    %3 = vector.load %arg5[%c0_5, %c0_6] : memref<32x1xf32, #tpu.memory_space<vmem>>, vector<32x1xf32>
    %c0_7 = arith.constant 0 : index
    %c0_8 = arith.constant 0 : index
    %4 = vector.load %arg6[%c0_7, %c0_8] : memref<32x1xf32, #tpu.memory_space<vmem>>, vector<32x1xf32>
    %c0_9 = arith.constant 0 : index
    %c0_10 = arith.constant 0 : index
    %5 = vector.load %arg7[%c0_9, %c0_10] : memref<1x1xf32, #tpu.memory_space<vmem>>, vector<1x1xf32>
    %c0_i32 = arith.constant 0 : i32
    %c512_i32 = arith.constant 512 : i32
    %6 = arith.muli %c0_i32, %c512_i32 : i32
    %7 = tpu.assume_multiple %6, 512 : i32
    %c0_11 = arith.constant 0 : index
    %8 = arith.index_cast %7 : i32 to index
    %9 = vector.load %arg1[%c0_11, %8] : memref<16x512xf32, #tpu.memory_space<vmem>>, vector<16x512xf32>
    %cst = arith.constant dense<0.000000e+00> : vector<32x512xf32>
    %10 = tpu.matmul %0, %9, %cst {dimension_numbers = #tpu.dot_dimension_numbers<[1], [0], [0], [1], [0, 0, 1, 1], [], []>} : vector<32x16xf32>, vector<16x512xf32>, vector<32x512xf32> -> vector<32x512xf32>
    %11 = vector.broadcast %1 : vector<32x1xf32> to vector<32x512xf32>
    %12 = arith.addf %10, %11 : vector<32x512xf32>
    %cst_12 = arith.constant 0.000000e+00 : f32
    %13 = vector.broadcast %cst_12 : f32 to vector<32x512xf32>
    %14 = arith.maximumf %12, %13 : vector<32x512xf32>
    %cst_13 = arith.constant dense<0.000000e+00> : vector<32x512xf32>
    %15 = tpu.matmul %2, %14, %cst_13 {dimension_numbers = #tpu.dot_dimension_numbers<[1], [0], [0], [1], [0, 0, 1, 1], [], []>} : vector<32x32xf32>, vector<32x512xf32>, vector<32x512xf32> -> vector<32x512xf32>
    %16 = vector.broadcast %3 : vector<32x1xf32> to vector<32x512xf32>
    %17 = arith.addf %15, %16 : vector<32x512xf32>
    %cst_14 = arith.constant 0.000000e+00 : f32
    %18 = vector.broadcast %cst_14 : f32 to vector<32x512xf32>
    %19 = arith.maximumf %17, %18 : vector<32x512xf32>
    %20 = vector.broadcast %4 : vector<32x1xf32> to vector<32x512xf32>
    %21 = arith.mulf %20, %19 : vector<32x512xf32>
    %cst_15 = arith.constant dense<0.000000e+00> : vector<512xf32>
    %22 = vector.multi_reduction <add>, %21, %cst_15 [0] : vector<32x512xf32> to vector<512xf32>
    %23 = vector.shape_cast %22 : vector<512xf32> to vector<1x512xf32>
    %24 = vector.broadcast %5 : vector<1x1xf32> to vector<1x512xf32>
    %25 = arith.addf %23, %24 : vector<1x512xf32>
    %26 = arith.index_cast %c0_i32 : i32 to index
    %c0_16 = arith.constant 0 : index
    %27 = vector.load %arg8[%26, %c0_16] : memref<1x512xf32, #tpu.memory_space<vmem>>, vector<1x512xf32>
    tpu.vector_store %arg8[%26, %c0_16], %25 {strides = array<i32>} : memref<1x512xf32, #tpu.memory_space<vmem>>, vector<1x512xf32>,
    %c1_i32 = arith.constant 1 : i32
    return
  }
  func.func @transform_0(%arg0: i32) -> (i32, i32) {
    %c0_i32 = arith.constant 0 : i32
    %c0_i32_0 = arith.constant 0 : i32
    return %c0_i32, %arg0 : i32, i32
  }
  func.func @transform_1(%arg0: i32) -> (i32, i32) {
    %c0_i32 = arith.constant 0 : i32
    %c0_i32_0 = arith.constant 0 : i32
    %c0_i32_1 = arith.constant 0 : i32
    return %c0_i32, %c0_i32_0 : i32, i32
  }
  func.func @transform_2(%arg0: i32) -> (i32, i32) {
    %c0_i32 = arith.constant 0 : i32
    %c0_i32_0 = arith.constant 0 : i32
    %c0_i32_1 = arith.constant 0 : i32
    return %c0_i32, %c0_i32_0 : i32, i32
  }
  func.func @transform_3(%arg0: i32) -> (i32, i32) {
    %c0_i32 = arith.constant 0 : i32
    %c0_i32_0 = arith.constant 0 : i32
    %c0_i32_1 = arith.constant 0 : i32
    return %c0_i32, %c0_i32_0 : i32, i32
  }
  func.func @transform_4(%arg0: i32) -> (i32, i32) {
    %c0_i32 = arith.constant 0 : i32
    %c0_i32_0 = arith.constant 0 : i32
    %c0_i32_1 = arith.constant 0 : i32
    return %c0_i32, %c0_i32_0 : i32, i32
  }
  func.func @transform_5(%arg0: i32) -> (i32, i32) {
    %c0_i32 = arith.constant 0 : i32
    %c0_i32_0 = arith.constant 0 : i32
    %c0_i32_1 = arith.constant 0 : i32
    return %c0_i32, %c0_i32_0 : i32, i32
  }
  func.func @transform_6(%arg0: i32) -> (i32, i32) {
    %c0_i32 = arith.constant 0 : i32
    %c0_i32_0 = arith.constant 0 : i32
    %c0_i32_1 = arith.constant 0 : i32
    return %c0_i32, %c0_i32_0 : i32, i32
  }
  func.func @transform_7(%arg0: i32) -> (i32, i32) {
    %c0_i32 = arith.constant 0 : i32
    %c0_i32_0 = arith.constant 0 : i32
    return %arg0, %c0_i32 : i32, i32
  }
}

</mosaic_0001>

<llo_original>
// kernel: tpu_custom_call.1
$region0: #{tpu_custom_call.1}
  #allocation0 [shape = 'u32[]', space=smem, size = 0x4, offset = 0x4, fixed_abs, tag = 'smem constant byte address 0x4 - core index']
  #allocation1 [shape = 'u32[144,128]{1,0:T(1,128)}', space=vmem, size = 0x12000, scoped, tag = 'internal scratch']
  #allocation2 [shape = 'f32[1,1]{1,0:T(1,128)S(1)}', space=vmem, size = 0x200, scoped, tag = 'scoped memory for tpu_custom_call.1']
  %s0 = inlined_call_operand.vmem [shape: f32[16,512], index: 0, kind: input, shape index: {}]
  %s1 = inlined_call_operand.vmem [shape: f32[32,16], index: 1, kind: input, shape index: {}]
  %s2 = inlined_call_operand.vmem [shape: f32[32,1], index: 2, kind: input, shape index: {}]
  %s3 = inlined_call_operand.vmem [shape: f32[32,32], index: 3, kind: input, shape index: {}]
  %s4 = inlined_call_operand.vmem [shape: f32[32,1], index: 4, kind: input, shape index: {}]
  %s5 = inlined_call_operand.vmem [shape: f32[32,1], index: 5, kind: input, shape index: {}]
  %s6 = inlined_call_operand.<no memory space> [shape: f32[1,1], index: 6, kind: input, shape index: {}]
  %s7 = inlined_call_operand.hbm [shape: f32[1,512], index: 7, kind: output, shape index: {}]
  %s8 = sld [smem:[#allocation0]]
  $region38: #{tpu_custom_call.1} parent=0
    _
  %s10 = ssub.s32 1, %s8
  %s11 = scalar_select 0, %s10, %s8
  %v12 = vstv %s6
  %13 = vst [vmem:[#allocation2] sm:$0x1] %v12
  $region1: #{tpu_custom_call.1} parent=0
    #allocation3 [shape = 'u8[2048]{0}', space=vmem, size = 0x800, scoped, tag = 'output window, operand 0, single buffered']
    #allocation4 [shape = 's32[1]{0}', space=sflag, size = 0x4, scoped, tag = 'scoped memory for tpu_custom_call.1']
    %14 = vsyncpa [#allocation4], 0
    // Predicated region
    $region2: #{tpu_custom_call.1} parent=1 // pred_check
      _
    $region3: #{tpu_custom_call.1} parent=1 // pred_check_branch
      %16 = sbr.rel (0) target = $region5
    $region4: #{tpu_custom_call.1} parent=1 // pred_region
      _
    $region5: #{tpu_custom_call.1} parent=1 // pred_fallthru
      _
    // Predicated region
    $region6: #{tpu_custom_call.1} parent=1 // pred_check
      _
    $region7: #{tpu_custom_call.1} parent=1 // pred_check_branch
      %18 = sbr.rel (0) target = $region9
    $region8: #{tpu_custom_call.1} parent=1 // pred_region
      _
    $region9: #{tpu_custom_call.1} parent=1 // pred_fallthru
      _
    // Predicated region
    $region10: #{tpu_custom_call.1} parent=1 // pred_check
      _
    $region11: #{tpu_custom_call.1} parent=1 // pred_check_branch
      %20 = sbr.rel (0) target = $region13
    $region12: #{tpu_custom_call.1} parent=1 // pred_region
      _
    $region13: #{tpu_custom_call.1} parent=1 // pred_fallthru
      _
    // Predicated region
    $region14: #{tpu_custom_call.1} parent=1 // pred_check
      _
    $region15: #{tpu_custom_call.1} parent=1 // pred_check_branch
      %22 = sbr.rel (0) target = $region17
    $region16: #{tpu_custom_call.1} parent=1 // pred_region
      _
    $region17: #{tpu_custom_call.1} parent=1 // pred_fallthru
      _
    // Predicated region
    $region18: #{tpu_custom_call.1} parent=1 // pred_check
      _
    $region19: #{tpu_custom_call.1} parent=1 // pred_check_branch
      %24 = sbr.rel (0) target = $region21
    $region20: #{tpu_custom_call.1} parent=1 // pred_region
      _
    $region21: #{tpu_custom_call.1} parent=1 // pred_fallthru
      _
    // Predicated region
    $region22: #{tpu_custom_call.1} parent=1 // pred_check
      _
    $region23: #{tpu_custom_call.1} parent=1 // pred_check_branch
      %26 = sbr.rel (0) target = $region25
    $region24: #{tpu_custom_call.1} parent=1 // pred_region
      _
    $region25: #{tpu_custom_call.1} parent=1 // pred_fallthru
      _
    // Predicated region
    $region26: #{tpu_custom_call.1} parent=1 // pred_check
      _
    $region27: #{tpu_custom_call.1} parent=1 // pred_check_branch
      %28 = sbr.rel (0) target = $region29
    $region28: #{tpu_custom_call.1} parent=1 // pred_region
      _
    $region29: #{tpu_custom_call.1} parent=1 // pred_fallthru
      _
    %v29 = vld [vmem:[%s1] sm:$0xff]
    %v30 = vld [vmem:[%s1 + $0x8] sm:$0xff]
    %v31 = vld [vmem:[%s1 + $0x10] sm:$0xff]
    %v32 = vld [vmem:[%s1 + $0x18] sm:$0xff]
    %v33 = vld [vmem:[%s2] sm:$0xff]
    %v34 = vld [vmem:[%s2 + $0x8] sm:$0xff]
    %v35 = vld [vmem:[%s2 + $0x10] sm:$0xff]
    %v36 = vld [vmem:[%s2 + $0x18] sm:$0xff]
    %v37 = vld [vmem:[%s3] sm:$0xff]
    %v38 = vld [vmem:[%s3 + $0x8] sm:$0xff]
    %v39 = vld [vmem:[%s3 + $0x10] sm:$0xff]
    %v40 = vld [vmem:[%s3 + $0x18] sm:$0xff]
    %v41 = vld [vmem:[%s4] sm:$0xff]
    %v42 = vld [vmem:[%s4 + $0x8] sm:$0xff]
    %v43 = vld [vmem:[%s4 + $0x10] sm:$0xff]
    %v44 = vld [vmem:[%s4 + $0x18] sm:$0xff]
    %v45 = vld [vmem:[%s5] sm:$0xff]
    %v46 = vld [vmem:[%s5 + $0x8] sm:$0xff]
    %v47 = vld [vmem:[%s5 + $0x10] sm:$0xff]
    %v48 = vld [vmem:[%s5 + $0x18] sm:$0xff]
    %v49 = vld [vmem:[#allocation2] sm:$0x1]
    %v50 = vld [vmem:[%s0] sm:$0xff]
    %v51 = vld [vmem:[%s0 + $0x8] sm:$0xff]
    %v52 = vld [vmem:[%s0 + $0x10] sm:$0xff]
    %v53 = vld [vmem:[%s0 + $0x18] sm:$0xff]
    %v54 = vld [vmem:[%s0 + $0x20] sm:$0xff]
    %v55 = vld [vmem:[%s0 + $0x28] sm:$0xff]
    %v56 = vld [vmem:[%s0 + $0x30] sm:$0xff]
    %v57 = vld [vmem:[%s0 + $0x38] sm:$0xff]
    %59 = vset.pattern.permute.xlu0 0
    %60 = vperm.xlu0 %59, %v33
    %v61 = vpop.permute.xlu0 %60
    %64 = vset.pattern.permute.xlu0 0
    %65 = vperm.xlu0 %64, %v34
    %v66 = vpop.permute.xlu0 %65
    %69 = vset.pattern.permute.xlu0 0
    %70 = vperm.xlu0 %69, %v35
    %v71 = vpop.permute.xlu0 %70
    %74 = vset.pattern.permute.xlu0 0
    %75 = vperm.xlu0 %74, %v36
    %v76 = vpop.permute.xlu0 %75
    %vm78 = vcmask 130048
    %v80 = vsel %vm78, %v29, 0
    %v83 = vsel %vm78, %v30, 0
    %v86 = vsel %vm78, %v31, 0
    %v89 = vsel %vm78, %v32, 0
    %91 = vmatprep.subr.mxu0 %v51
    %92 = vmatpush1.msra.mxu0 %v50
    %93 = vmatprep.subr.mxu0 %v55
    %94 = vmatpush1.msra.mxu0 %v54
    %95 = vmatprep.subr.mxu0 0.0
    %96 = vmatpush1.msra.mxu0 0.0
    %97 = vmatprep.subr.mxu0 0.0
    %98 = vmatpush1.msra.mxu0 0.0
    %99 = vmatprep.subr.mxu0 0.0
    %100 = vmatpush1.msra.mxu0 0.0
    %101 = vmatprep.subr.mxu0 0.0
    %102 = vmatpush1.msra.mxu0 0.0
    %103 = vmatprep.subr.mxu0 0.0
    %104 = vmatpush1.msra.mxu0 0.0
    %105 = vmatprep.subr.mxu0 0.0
    %106 = vmatpush1.msra.mxu0 0.0
    %107 = vmatprep.subr.mxu0 0.0
    %108 = vmatpush1.msra.mxu0 0.0
    %109 = vmatprep.subr.mxu0 0.0
    %110 = vmatpush1.msra.mxu0 0.0
    %111 = vmatprep.subr.mxu0 0.0
    %112 = vmatpush1.msra.mxu0 0.0
    %113 = vmatprep.subr.mxu0 0.0
    %114 = vmatpush1.msra.mxu0 0.0
    %115 = vmatprep.subr.mxu0 0.0
    %116 = vmatpush1.msra.mxu0 0.0
    %117 = vmatprep.subr.mxu0 0.0
    %118 = vmatpush1.msra.mxu0 0.0
    %119 = vmatprep.subr.mxu0 0.0
    %120 = vmatpush1.msra.mxu0 0.0
    %121 = vmatprep.subr.mxu0 0.0
    %122 = vmatpush1.msra.mxu0 0.0
    %123 = vmatprep.subr.mxu0 0.0
    %124 = vmatpush1.msra.mxu0 0.0
    %125 = vmatprep.subr.mxu0 0.0
    %126 = vmatpush1.msra.mxu0 0.0
    %127 = vmatprep.subr.mxu0 0.0
    %128 = vmatpush1.msra.mxu0 0.0
    %129 = vmatprep.subr.mxu0 0.0
    %130 = vmatpush1.msra.mxu0 0.0
    %131 = vmatprep.subr.mxu0 0.0
    %132 = vmatpush1.msra.mxu0 0.0
    %133 = vmatprep.subr.mxu0 0.0
    %134 = vmatpush1.msra.mxu0 0.0
    %135 = vmatprep.subr.mxu0 0.0
    %136 = vmatpush1.msra.mxu0 0.0
    %137 = vmatprep.subr.mxu0 0.0
    %138 = vmatpush1.msra.mxu0 0.0
    %139 = vmatprep.subr.mxu0 0.0
    %140 = vmatpush1.msra.mxu0 0.0
    %141 = vmatprep.subr.mxu0 0.0
    %142 = vmatpush1.msra.mxu0 0.0
    %143 = vmatprep.subr.mxu0 0.0
    %144 = vmatpush1.msra.mxu0 0.0
    %145 = vmatprep.subr.mxu0 0.0
    %146 = vmatpush1.msra.mxu0 0.0
    %147 = vmatprep.subr.mxu0 0.0
    %148 = vmatpush1.msra.mxu0 0.0
    %149 = vmatprep.subr.mxu0 0.0
    %150 = vmatpush1.msra.mxu0 0.0
    %151 = vmatprep.subr.mxu0 0.0
    %152 = vmatpush1.msra.mxu0 0.0
    %153 = vmatprep.subr.mxu0 0.0
    %154 = vmatpush1.msra.mxu0 0.0
    %155 = vmatprep.mubr.f32.mxu0 0.0
    %156 = vmatmul.mubr.f32.gmra.mrb[0].mxu0 %v80
    %v157 = vpop.f32.mrb[0].mxu0
    %v158 = vadd.f32 %v61, %v157
    %v159 = vpop.f32.mrb[0].mxu0
    %v160 = vadd.f32 %v61, %v159
    %161 = vmatprep.mubr.f32.mxu0 0.0
    %162 = vmatmul.mubr.f32.gmra.mrb[0].mxu0 %v83
    %v163 = vpop.f32.mrb[0].mxu0
    %v164 = vadd.f32 %v66, %v163
    %v165 = vpop.f32.mrb[0].mxu0
    %v166 = vadd.f32 %v66, %v165
    %167 = vmatprep.mubr.f32.mxu0 0.0
    %168 = vmatmul.mubr.f32.gmra.mrb[0].mxu0 %v86
    %v169 = vpop.f32.mrb[0].mxu0
    %v170 = vadd.f32 %v71, %v169
    %v171 = vpop.f32.mrb[0].mxu0
    %v172 = vadd.f32 %v71, %v171
    %173 = vmatprep.mubr.f32.mxu0 0.0
    %174 = vmatmul.mubr.f32.gmra.mrb[0].mxu0 %v89
    %v175 = vpop.f32.mrb[0].mxu0
    %v176 = vadd.f32 %v76, %v175
    %v177 = vpop.f32.mrb[0].mxu0
    %v178 = vadd.f32 %v76, %v177
    %179 = vdwg.mxu0
    %180 = vmatprep.subr.mxu0 %v53
    %181 = vmatpush1.msra.mxu0 %v52
    %182 = vmatprep.subr.mxu0 %v57
    %183 = vmatpush1.msra.mxu0 %v56
    %184 = vmatprep.subr.mxu0 0.0
    %185 = vmatpush1.msra.mxu0 0.0
    %186 = vmatprep.subr.mxu0 0.0
    %187 = vmatpush1.msra.mxu0 0.0
    %188 = vmatprep.subr.mxu0 0.0
    %189 = vmatpush1.msra.mxu0 0.0
    %190 = vmatprep.subr.mxu0 0.0
    %191 = vmatpush1.msra.mxu0 0.0
    %192 = vmatprep.subr.mxu0 0.0
    %193 = vmatpush1.msra.mxu0 0.0
    %194 = vmatprep.subr.mxu0 0.0
    %195 = vmatpush1.msra.mxu0 0.0
    %196 = vmatprep.subr.mxu0 0.0
    %197 = vmatpush1.msra.mxu0 0.0
    %198 = vmatprep.subr.mxu0 0.0
    %199 = vmatpush1.msra.mxu0 0.0
    %200 = vmatprep.subr.mxu0 0.0
    %201 = vmatpush1.msra.mxu0 0.0
    %202 = vmatprep.subr.mxu0 0.0
    %203 = vmatpush1.msra.mxu0 0.0
    %204 = vmatprep.subr.mxu0 0.0
    %205 = vmatpush1.msra.mxu0 0.0
    %206 = vmatprep.subr.mxu0 0.0
    %207 = vmatpush1.msra.mxu0 0.0
    %208 = vmatprep.subr.mxu0 0.0
    %209 = vmatpush1.msra.mxu0 0.0
    %210 = vmatprep.subr.mxu0 0.0
    %211 = vmatpush1.msra.mxu0 0.0
    %212 = vmatprep.subr.mxu0 0.0
    %213 = vmatpush1.msra.mxu0 0.0
    %214 = vmatprep.subr.mxu0 0.0
    %215 = vmatpush1.msra.mxu0 0.0
    %216 = vmatprep.subr.mxu0 0.0
    %217 = vmatpush1.msra.mxu0 0.0
    %218 = vmatprep.subr.mxu0 0.0
    %219 = vmatpush1.msra.mxu0 0.0
    %220 = vmatprep.subr.mxu0 0.0
    %221 = vmatpush1.msra.mxu0 0.0
    %222 = vmatprep.subr.mxu0 0.0
    %223 = vmatpush1.msra.mxu0 0.0
    %224 = vmatprep.subr.mxu0 0.0
    %225 = vmatpush1.msra.mxu0 0.0
    %226 = vmatprep.subr.mxu0 0.0
    %227 = vmatpush1.msra.mxu0 0.0
    %228 = vmatprep.subr.mxu0 0.0
    %229 = vmatpush1.msra.mxu0 0.0
    %230 = vmatprep.subr.mxu0 0.0
    %231 = vmatpush1.msra.mxu0 0.0
    %232 = vmatprep.subr.mxu0 0.0
    %233 = vmatpush1.msra.mxu0 0.0
    %234 = vmatprep.subr.mxu0 0.0
    %235 = vmatpush1.msra.mxu0 0.0
    %236 = vmatprep.subr.mxu0 0.0
    %237 = vmatpush1.msra.mxu0 0.0
    %238 = vmatprep.subr.mxu0 0.0
    %239 = vmatpush1.msra.mxu0 0.0
    %240 = vmatprep.subr.mxu0 0.0
    %241 = vmatpush1.msra.mxu0 0.0
    %242 = vmatprep.subr.mxu0 0.0
    %243 = vmatpush1.msra.mxu0 0.0
    %244 = vmatprep.mubr.f32.mxu0 0.0
    %245 = vmatmul.mubr.f32.gmra.mrb[0].mxu0 %v80
    %v246 = vpop.f32.mrb[0].mxu0
    %v247 = vadd.f32 %v61, %v246
    %v248 = vpop.f32.mrb[0].mxu0
    %v249 = vadd.f32 %v61, %v248
    %250 = vmatprep.mubr.f32.mxu0 0.0
    %251 = vmatmul.mubr.f32.gmra.mrb[0].mxu0 %v83
    %v252 = vpop.f32.mrb[0].mxu0
    %v253 = vadd.f32 %v66, %v252
    %v254 = vpop.f32.mrb[0].mxu0
    %v255 = vadd.f32 %v66, %v254
    %256 = vmatprep.mubr.f32.mxu0 0.0
    %257 = vmatmul.mubr.f32.gmra.mrb[0].mxu0 %v86
    %v258 = vpop.f32.mrb[0].mxu0
    %v259 = vadd.f32 %v71, %v258
    %v260 = vpop.f32.mrb[0].mxu0
    %v261 = vadd.f32 %v71, %v260
    %262 = vmatprep.mubr.f32.mxu0 0.0
    %263 = vmatmul.mubr.f32.gmra.mrb[0].mxu0 %v89
    %v264 = vpop.f32.mrb[0].mxu0
    %v265 = vadd.f32 %v76, %v264
    %v266 = vpop.f32.mrb[0].mxu0
    %v267 = vadd.f32 %v76, %v266
    %268 = vdwg.mxu0
    %v269 = vmax.f32 %v158, 0.0
    %v270 = vmax.f32 %v160, 0.0
    %v271 = vmax.f32 %v247, 0.0
    %v272 = vmax.f32 %v249, 0.0
    %v273 = vmax.f32 %v164, 0.0
    %v274 = vmax.f32 %v166, 0.0
    %v275 = vmax.f32 %v253, 0.0
    %v276 = vmax.f32 %v255, 0.0
    %v277 = vmax.f32 %v170, 0.0
    %v278 = vmax.f32 %v172, 0.0
    %v279 = vmax.f32 %v259, 0.0
    %v280 = vmax.f32 %v261, 0.0
    %v281 = vmax.f32 %v176, 0.0
    %v282 = vmax.f32 %v178, 0.0
    %v283 = vmax.f32 %v265, 0.0
    %v284 = vmax.f32 %v267, 0.0
    %286 = vset.pattern.permute.xlu0 0
    %287 = vperm.xlu0 %286, %v41
    %v288 = vpop.permute.xlu0 %287
    %291 = vset.pattern.permute.xlu0 0
    %292 = vperm.xlu0 %291, %v42
    %v293 = vpop.permute.xlu0 %292
    %296 = vset.pattern.permute.xlu0 0
    %297 = vperm.xlu0 %296, %v43
    %v298 = vpop.permute.xlu0 %297
    %301 = vset.pattern.permute.xlu0 0
    %302 = vperm.xlu0 %301, %v44
    %v303 = vpop.permute.xlu0 %302
    %vm305 = vcmask 261120
    %v307 = vsel %vm305, %v37, 0
    %v310 = vsel %vm305, %v38, 0
    %v313 = vsel %vm305, %v39, 0
    %v316 = vsel %vm305, %v40, 0
    %318 = vmatprep.subr.mxu0 %v270
    %319 = vmatpush1.msra.mxu0 %v269
    %320 = vmatprep.subr.mxu0 %v274
    %321 = vmatpush1.msra.mxu0 %v273
    %322 = vmatprep.subr.mxu0 %v278
    %323 = vmatpush1.msra.mxu0 %v277
    %324 = vmatprep.subr.mxu0 %v282
    %325 = vmatpush1.msra.mxu0 %v281
    %326 = vmatprep.subr.mxu0 0.0
    %327 = vmatpush1.msra.mxu0 0.0
    %328 = vmatprep.subr.mxu0 0.0
    %329 = vmatpush1.msra.mxu0 0.0
    %330 = vmatprep.subr.mxu0 0.0
    %331 = vmatpush1.msra.mxu0 0.0
    %332 = vmatprep.subr.mxu0 0.0
    %333 = vmatpush1.msra.mxu0 0.0
    %334 = vmatprep.subr.mxu0 0.0
    %335 = vmatpush1.msra.mxu0 0.0
    %336 = vmatprep.subr.mxu0 0.0
    %337 = vmatpush1.msra.mxu0 0.0
    %338 = vmatprep.subr.mxu0 0.0
    %339 = vmatpush1.msra.mxu0 0.0
    %340 = vmatprep.subr.mxu0 0.0
    %341 = vmatpush1.msra.mxu0 0.0
    %342 = vmatprep.subr.mxu0 0.0
    %343 = vmatpush1.msra.mxu0 0.0
    %344 = vmatprep.subr.mxu0 0.0
    %345 = vmatpush1.msra.mxu0 0.0
    %346 = vmatprep.subr.mxu0 0.0
    %347 = vmatpush1.msra.mxu0 0.0
    %348 = vmatprep.subr.mxu0 0.0
    %349 = vmatpush1.msra.mxu0 0.0
    %350 = vmatprep.subr.mxu0 0.0
    %351 = vmatpush1.msra.mxu0 0.0
    %352 = vmatprep.subr.mxu0 0.0
    %353 = vmatpush1.msra.mxu0 0.0
    %354 = vmatprep.subr.mxu0 0.0
    %355 = vmatpush1.msra.mxu0 0.0
    %356 = vmatprep.subr.mxu0 0.0
    %357 = vmatpush1.msra.mxu0 0.0
    %358 = vmatprep.subr.mxu0 0.0
    %359 = vmatpush1.msra.mxu0 0.0
    %360 = vmatprep.subr.mxu0 0.0
    %361 = vmatpush1.msra.mxu0 0.0
    %362 = vmatprep.subr.mxu0 0.0
    %363 = vmatpush1.msra.mxu0 0.0
    %364 = vmatprep.subr.mxu0 0.0
    %365 = vmatpush1.msra.mxu0 0.0
    %366 = vmatprep.subr.mxu0 0.0
    %367 = vmatpush1.msra.mxu0 0.0
    %368 = vmatprep.subr.mxu0 0.0
    %369 = vmatpush1.msra.mxu0 0.0
    %370 = vmatprep.subr.mxu0 0.0
    %371 = vmatpush1.msra.mxu0 0.0
    %372 = vmatprep.subr.mxu0 0.0
    %373 = vmatpush1.msra.mxu0 0.0
    %374 = vmatprep.subr.mxu0 0.0
    %375 = vmatpush1.msra.mxu0 0.0
    %376 = vmatprep.subr.mxu0 0.0
    %377 = vmatpush1.msra.mxu0 0.0
    %378 = vmatprep.subr.mxu0 0.0
    %379 = vmatpush1.msra.mxu0 0.0
    %380 = vmatprep.subr.mxu0 0.0
    %381 = vmatpush1.msra.mxu0 0.0
    %382 = vmatprep.mubr.f32.mxu0 0.0
    %383 = vmatmul.mubr.f32.gmra.mrb[0].mxu0 %v307
    %v384 = vpop.f32.mrb[0].mxu0
    %v385 = vadd.f32 %v288, %v384
    %v386 = vpop.f32.mrb[0].mxu0
    %v387 = vadd.f32 %v288, %v386
    %388 = vmatprep.mubr.f32.mxu0 0.0
    %389 = vmatmul.mubr.f32.gmra.mrb[0].mxu0 %v310
    %v390 = vpop.f32.mrb[0].mxu0
    %v391 = vadd.f32 %v293, %v390
    %v392 = vpop.f32.mrb[0].mxu0
    %v393 = vadd.f32 %v293, %v392
    %394 = vmatprep.mubr.f32.mxu0 0.0
    %395 = vmatmul.mubr.f32.gmra.mrb[0].mxu0 %v313
    %v396 = vpop.f32.mrb[0].mxu0
    %v397 = vadd.f32 %v298, %v396
    %v398 = vpop.f32.mrb[0].mxu0
    %v399 = vadd.f32 %v298, %v398
    %400 = vmatprep.mubr.f32.mxu0 0.0
    %401 = vmatmul.mubr.f32.gmra.mrb[0].mxu0 %v316
    %v402 = vpop.f32.mrb[0].mxu0
    %v403 = vadd.f32 %v303, %v402
    %v404 = vpop.f32.mrb[0].mxu0
    %v405 = vadd.f32 %v303, %v404
    %406 = vdwg.mxu0
    %407 = vmatprep.subr.mxu0 %v272
    %408 = vmatpush1.msra.mxu0 %v271
    %409 = vmatprep.subr.mxu0 %v276
    %410 = vmatpush1.msra.mxu0 %v275
    %411 = vmatprep.subr.mxu0 %v280
    %412 = vmatpush1.msra.mxu0 %v279
    %413 = vmatprep.subr.mxu0 %v284
    %414 = vmatpush1.msra.mxu0 %v283
    %415 = vmatprep.subr.mxu0 0.0
    %416 = vmatpush1.msra.mxu0 0.0
    %417 = vmatprep.subr.mxu0 0.0
    %418 = vmatpush1.msra.mxu0 0.0
    %419 = vmatprep.subr.mxu0 0.0
    %420 = vmatpush1.msra.mxu0 0.0
    %421 = vmatprep.subr.mxu0 0.0
    %422 = vmatpush1.msra.mxu0 0.0
    %423 = vmatprep.subr.mxu0 0.0
    %424 = vmatpush1.msra.mxu0 0.0
    %425 = vmatprep.subr.mxu0 0.0
    %426 = vmatpush1.msra.mxu0 0.0
    %427 = vmatprep.subr.mxu0 0.0
    %428 = vmatpush1.msra.mxu0 0.0
    %429 = vmatprep.subr.mxu0 0.0
    %430 = vmatpush1.msra.mxu0 0.0
    %431 = vmatprep.subr.mxu0 0.0
    %432 = vmatpush1.msra.mxu0 0.0
    %433 = vmatprep.subr.mxu0 0.0
    %434 = vmatpush1.msra.mxu0 0.0
    %435 = vmatprep.subr.mxu0 0.0
    %436 = vmatpush1.msra.mxu0 0.0
    %437 = vmatprep.subr.mxu0 0.0
    %438 = vmatpush1.msra.mxu0 0.0
    %439 = vmatprep.subr.mxu0 0.0
    %440 = vmatpush1.msra.mxu0 0.0
    %441 = vmatprep.subr.mxu0 0.0
    %442 = vmatpush1.msra.mxu0 0.0
    %443 = vmatprep.subr.mxu0 0.0
    %444 = vmatpush1.msra.mxu0 0.0
    %445 = vmatprep.subr.mxu0 0.0
    %446 = vmatpush1.msra.mxu0 0.0
    %447 = vmatprep.subr.mxu0 0.0
    %448 = vmatpush1.msra.mxu0 0.0
    %449 = vmatprep.subr.mxu0 0.0
    %450 = vmatpush1.msra.mxu0 0.0
    %451 = vmatprep.subr.mxu0 0.0
    %452 = vmatpush1.msra.mxu0 0.0
    %453 = vmatprep.subr.mxu0 0.0
    %454 = vmatpush1.msra.mxu0 0.0
    %455 = vmatprep.subr.mxu0 0.0
    %456 = vmatpush1.msra.mxu0 0.0
    %457 = vmatprep.subr.mxu0 0.0
    %458 = vmatpush1.msra.mxu0 0.0
    %459 = vmatprep.subr.mxu0 0.0
    %460 = vmatpush1.msra.mxu0 0.0
    %461 = vmatprep.subr.mxu0 0.0
    %462 = vmatpush1.msra.mxu0 0.0
    %463 = vmatprep.subr.mxu0 0.0
    %464 = vmatpush1.msra.mxu0 0.0
    %465 = vmatprep.subr.mxu0 0.0
    %466 = vmatpush1.msra.mxu0 0.0
    %467 = vmatprep.subr.mxu0 0.0
    %468 = vmatpush1.msra.mxu0 0.0
    %469 = vmatprep.subr.mxu0 0.0
    %470 = vmatpush1.msra.mxu0 0.0
    %471 = vmatprep.mubr.f32.mxu0 0.0
    %472 = vmatmul.mubr.f32.gmra.mrb[0].mxu0 %v307
    %v473 = vpop.f32.mrb[0].mxu0
    %v474 = vadd.f32 %v288, %v473
    %v475 = vpop.f32.mrb[0].mxu0
    %v476 = vadd.f32 %v288, %v475
    %477 = vmatprep.mubr.f32.mxu0 0.0
    %478 = vmatmul.mubr.f32.gmra.mrb[0].mxu0 %v310
    %v479 = vpop.f32.mrb[0].mxu0
    %v480 = vadd.f32 %v293, %v479
    %v481 = vpop.f32.mrb[0].mxu0
    %v482 = vadd.f32 %v293, %v481
    %483 = vmatprep.mubr.f32.mxu0 0.0
    %484 = vmatmul.mubr.f32.gmra.mrb[0].mxu0 %v313
    %v485 = vpop.f32.mrb[0].mxu0
    %v486 = vadd.f32 %v298, %v485
    %v487 = vpop.f32.mrb[0].mxu0
    %v488 = vadd.f32 %v298, %v487
    %489 = vmatprep.mubr.f32.mxu0 0.0
    %490 = vmatmul.mubr.f32.gmra.mrb[0].mxu0 %v316
    %v491 = vpop.f32.mrb[0].mxu0
    %v492 = vadd.f32 %v303, %v491
    %v493 = vpop.f32.mrb[0].mxu0
    %v494 = vadd.f32 %v303, %v493
    %495 = vdwg.mxu0
    %v496 = vmax.f32 %v385, 0.0
    %v497 = vmax.f32 %v387, 0.0
    %v498 = vmax.f32 %v474, 0.0
    %v499 = vmax.f32 %v476, 0.0
    %v500 = vmax.f32 %v391, 0.0
    %v501 = vmax.f32 %v393, 0.0
    %v502 = vmax.f32 %v480, 0.0
    %v503 = vmax.f32 %v482, 0.0
    %v504 = vmax.f32 %v397, 0.0
    %v505 = vmax.f32 %v399, 0.0
    %v506 = vmax.f32 %v486, 0.0
    %v507 = vmax.f32 %v488, 0.0
    %v508 = vmax.f32 %v403, 0.0
    %v509 = vmax.f32 %v405, 0.0
    %v510 = vmax.f32 %v492, 0.0
    %v511 = vmax.f32 %v494, 0.0
    %513 = vset.pattern.permute.xlu0 0
    %514 = vperm.xlu0 %513, %v45
    %v515 = vpop.permute.xlu0 %514
    %518 = vset.pattern.permute.xlu0 0
    %519 = vperm.xlu0 %518, %v46
    %v520 = vpop.permute.xlu0 %519
    %523 = vset.pattern.permute.xlu0 0
    %524 = vperm.xlu0 %523, %v47
    %v525 = vpop.permute.xlu0 %524
    %528 = vset.pattern.permute.xlu0 0
    %529 = vperm.xlu0 %528, %v48
    %v530 = vpop.permute.xlu0 %529
    %v532 = vmul.f32 %v515, %v496
    %v533 = vmul.f32 %v515, %v497
    %v534 = vmul.f32 %v515, %v498
    %v535 = vmul.f32 %v515, %v499
    %v536 = vmul.f32 %v520, %v500
    %v537 = vmul.f32 %v520, %v501
    %v538 = vmul.f32 %v520, %v502
    %v539 = vmul.f32 %v520, %v503
    %v540 = vmul.f32 %v525, %v504
    %v541 = vmul.f32 %v525, %v505
    %v542 = vmul.f32 %v525, %v506
    %v543 = vmul.f32 %v525, %v507
    %v544 = vmul.f32 %v530, %v508
    %v545 = vmul.f32 %v530, %v509
    %v546 = vmul.f32 %v530, %v510
    %v547 = vmul.f32 %v530, %v511
    %v548 = vadd.f32 %v532, %v536
    %v549 = vadd.f32 %v548, %v540
    %v550 = vadd.f32 %v549, %v544
    %v551 = vrot.slane %v550, 4
    %v552 = vadd.f32 %v550, %v551
    %v553 = vrot.slane %v552, 2
    %v554 = vadd.f32 %v552, %v553
    %v555 = vrot.slane %v554, 1
    %v556 = vadd.f32 %v554, %v555
    %v557 = vadd.f32 %v533, %v537
    %v558 = vadd.f32 %v557, %v541
    %v559 = vadd.f32 %v558, %v545
    %v560 = vrot.slane %v559, 4
    %v561 = vadd.f32 %v559, %v560
    %v562 = vrot.slane %v561, 2
    %v563 = vadd.f32 %v561, %v562
    %v564 = vrot.slane %v563, 1
    %v565 = vadd.f32 %v563, %v564
    %v566 = vadd.f32 %v534, %v538
    %v567 = vadd.f32 %v566, %v542
    %v568 = vadd.f32 %v567, %v546
    %v569 = vrot.slane %v568, 4
    %v570 = vadd.f32 %v568, %v569
    %v571 = vrot.slane %v570, 2
    %v572 = vadd.f32 %v570, %v571
    %v573 = vrot.slane %v572, 1
    %v574 = vadd.f32 %v572, %v573
    %v575 = vadd.f32 %v535, %v539
    %v576 = vadd.f32 %v575, %v543
    %v577 = vadd.f32 %v576, %v547
    %v578 = vrot.slane %v577, 4
    %v579 = vadd.f32 %v577, %v578
    %v580 = vrot.slane %v579, 2
    %v581 = vadd.f32 %v579, %v580
    %v582 = vrot.slane %v581, 1
    %v583 = vadd.f32 %v581, %v582
    %585 = vset.pattern.permute.xlu0 0
    %586 = vperm.xlu0 %585, %v49
    %v587 = vpop.permute.xlu0 %586
    %v589 = vlaneseq
    %v590 = vshrl.u32 %v589, 7
    %v591 = vsub.s32 0, %v590
    %v592 = vrot.slane %v587, %v591
    %v593 = vadd.f32 %v556, %v592
    %v594 = vadd.f32 %v565, %v592
    %v595 = vadd.f32 %v574, %v592
    %v596 = vadd.f32 %v583, %v592
    %v601 = vcombine.low %v593, %v594
    %v602 = vcombine.low %v595, %v596
    %v604 = vunpack.c.l.s4 1966171168
    %v605 = vunpack.c.0.s8 %v604
    %v606 = vlaneseq
    %v607 = vshrl.u32 %v606, 7
    %v608 = vsub.s32 %v605, %v607
    %v609 = vrot.slane %v601, %v608
    %v611 = vunpack.c.l.s4 1966171168
    %v612 = vunpack.c.0.s8 %v611
    %v613 = vlaneseq
    %v614 = vshrl.u32 %v613, 7
    %v615 = vsub.s32 %v612, %v614
    %v616 = vrot.slane %v602, %v615
    %v617 = vcombine.low %v609, %v616
    %v619 = vunpack.c.l.s4 1966171168
    %v620 = vunpack.c.0.s8 %v619
    %v621 = vlaneseq
    %v622 = vshrl.u32 %v621, 7
    %v623 = vsub.s32 %v620, %v622
    %v624 = vrot.slane %v617, %v623
    %v626 = vlaneseq
    %vm627 = vcmp.ge.s32.totalorder %v626, 0
    %vm628 = vcmp.lt.s32.totalorder %v626, 512
    %vm629 = vmand %vm627, %vm628
    %630 = vst.msk [vmem:[#allocation3] sm:$0xf] %vm629, %v624
    // Predicated region
    $region30: #{tpu_custom_call.1} parent=1 // pred_check
      _
    $region31: #{tpu_custom_call.1} parent=1 // pred_check_branch
      %632 = sbr.rel (0) target = $region33
    $region32: #{tpu_custom_call.1} parent=1 // pred_region
      %s634 = ssub.s32 64, 64
      %635 = vsyncadd [#allocation4], %s634
      %s637 = sshll.u32 [#allocation3], 4
      %s638 = int_to_ptr.vmem [resolvable:$true] %s637
      %640 = dma.vmem_to_hbm [thread:$0]  %s638, 64, %s7, [#allocation4]
    $region33: #{tpu_custom_call.1} parent=1 // pred_fallthru
      _
    // Predicated region
    $region34: #{tpu_custom_call.1} parent=1 // pred_check
      _
    $region35: #{tpu_custom_call.1} parent=1 // pred_check_branch
      %642 = sbr.rel (0) target = $region37
    $region36: #{tpu_custom_call.1} parent=1 // pred_region
      %643 = dma.done [#allocation4], 64
    $region37: #{tpu_custom_call.1} parent=1 // pred_fallthru
      _
    %644 = vsyncpa [#allocation4], 1

</llo_original>
